<compile_context>
chip_gen: v6e
topology: v6e:2x2x1
jax: 0.10.0
libtpu: 0.0.40
codegen_flags: <defaults>
</compile_context>

<pallas_src>
import functools

import jax
import jax.numpy as jnp
from jax.experimental import pallas as pl
from jax.experimental.pallas import tpu as pltpu

_LANES = 128
_EPS = 1e-5
_VMEM_SPEC = pl.BlockSpec(memory_space=pltpu.MemorySpace.VMEM)


def _round_up(n, m):
    return ((n + m - 1) // m) * m


def _pad_axis(x, target, axis):
    pad = target - x.shape[axis]
    if pad <= 0:
        return x
    widths = [(0, 0)] * x.ndim
    widths[axis] = (0, pad)
    return jnp.pad(x, widths)


# ---------------------------------------------------------------------------
# Fused kernel: whole network in one body (everything stays resident in VMEM)
# ---------------------------------------------------------------------------
def _make_fsnet_kernel(num_hidden):
    def kernel(*refs):
        # refs = (x, [w_i, gb_i] * num_hidden, w_out, b_out, o_ref)
        x_ref = refs[0]
        o_ref = refs[-1]
        h = x_ref[...]
        idx = 1
        for _ in range(num_hidden):
            w_ref = refs[idx]
            gb_ref = refs[idx + 1]
            idx += 2
            z = jnp.dot(h, w_ref[...], preferred_element_type=jnp.float32)
            # BatchNorm1d with batch stats (biased variance), fused scale/shift.
            mean = jnp.mean(z, axis=0, keepdims=True)            # (1, H)
            mean_sq = jnp.mean(z * z, axis=0, keepdims=True)     # (1, H)
            var = mean_sq - mean * mean
            scale = gb_ref[0:1, :] * jax.lax.rsqrt(var + _EPS)   # gamma row
            shift = gb_ref[1:2, :] - mean * scale                # beta row
            h = jnp.maximum(z * scale + shift, 0.0)
            # Dropout (if configured for this layer) is identity in eval mode.
        w_out_ref = refs[idx]
        b_out_ref = refs[idx + 1]
        out = jnp.dot(h, w_out_ref[...], preferred_element_type=jnp.float32)
        o_ref[...] = (out + b_out_ref[...]).astype(o_ref.dtype)

    return kernel


# ---------------------------------------------------------------------------
# Parameter init (natural shapes) + padding to 128-lane layouts
# ---------------------------------------------------------------------------
def init_fsnet_params(key, in_size, hidden_sizes, out_size):
    """torch-like init; Linear weights stored transposed as (in, out)."""
    params = {"hidden": [], "w_out": None, "b_out": None}
    current = in_size
    for h_dim in hidden_sizes:
        key, kw = jax.random.split(key)
        bound = 1.0 / jnp.sqrt(current)
        w = jax.random.uniform(kw, (current, h_dim), jnp.float32, -bound, bound)
        gamma = jnp.ones((h_dim,), jnp.float32)   # BatchNorm1d weight
        beta = jnp.zeros((h_dim,), jnp.float32)   # BatchNorm1d bias
        params["hidden"].append((w, gamma, beta))
        current = h_dim
    key, kw, kb = jax.random.split(key, 3)
    bound = 1.0 / jnp.sqrt(current)
    params["w_out"] = jax.random.uniform(kw, (current, out_size), jnp.float32,
                                         -bound, bound)
    params["b_out"] = jax.random.uniform(kb, (out_size,), jnp.float32,
                                         -bound, bound)
    return params


def pad_fsnet_params(params):
    """Zero-pad all feature dims to multiples of 128; stack gamma/beta to (2,H)."""
    padded = {"hidden": []}
    prev_pad = None  # padded size of the previous layer's output
    for (w, gamma, beta) in params["hidden"]:
        in_dim, h_dim = w.shape
        in_pad = prev_pad if prev_pad is not None else in_dim  # x itself unpadded
        h_pad = _round_up(h_dim, _LANES)
        w_p = _pad_axis(_pad_axis(w, in_pad, 0), h_pad, 1)
        gb = jnp.stack([gamma, beta], axis=0)                  # (2, h_dim)
        gb_p = _pad_axis(gb, h_pad, 1)                         # padded gamma/beta = 0
        padded["hidden"].append((w_p, gb_p))
        prev_pad = h_pad
    in_dim, out_dim = params["w_out"].shape
    in_pad = prev_pad if prev_pad is not None else in_dim
    out_pad = _round_up(out_dim, _LANES)
    padded["w_out"] = _pad_axis(_pad_axis(params["w_out"], in_pad, 0), out_pad, 1)
    padded["b_out"] = _pad_axis(params["b_out"].reshape(1, -1), out_pad, 1)
    return padded


# ---------------------------------------------------------------------------
# Forward (single jit, single pallas_call)
# ---------------------------------------------------------------------------
@functools.partial(jax.jit, static_argnames=("out_size",))
def fsnet_forward(x, padded_params, *, out_size):
    args = [x]
    for (w, gb) in padded_params["hidden"]:
        args.extend((w, gb))
    args.extend((padded_params["w_out"], padded_params["b_out"]))

    n = x.shape[0]
    out_pad = padded_params["w_out"].shape[1]
    out = pl.pallas_call(
        _make_fsnet_kernel(len(padded_params["hidden"])),
        out_shape=jax.ShapeDtypeStruct((n, out_pad), jnp.float32),
        in_specs=[_VMEM_SPEC] * len(args),
        out_specs=_VMEM_SPEC,
    )(*args)
    return out[:, :out_size]


# Pure-JAX reference (unpadded params) for a sanity check.
def fsnet_reference(x, params):
    h = x
    for (w, gamma, beta) in params["hidden"]:
        z = h @ w
        mean = jnp.mean(z, axis=0, keepdims=True)
        var = jnp.mean((z - mean) ** 2, axis=0, keepdims=True)
        z = (z - mean) * jax.lax.rsqrt(var + _EPS) * gamma + beta
        h = jnp.maximum(z, 0.0)
    return h @ params["w_out"] + params["b_out"]


if __name__ == "__main__":
    key = jax.random.PRNGKey(0)
    batch = 8
    in_size, hidden_sizes, out_size = 32, [64, 48], 16

    kx, kp = jax.random.split(key)
    x = jax.random.normal(kx, (batch, in_size), jnp.float32)
    params = init_fsnet_params(kp, in_size, hidden_sizes, out_size)
    padded_params = pad_fsnet_params(params)

    out = fsnet_forward(x, padded_params, out_size=out_size)
    out = jax.block_until_ready(out)

    ref = fsnet_reference(x, params)
    assert out.shape == (batch, out_size)
    assert jnp.allclose(out, ref, atol=1e-4, rtol=1e-4), "mismatch vs reference"

    print("KERNEL_OK")
</pallas_src>

<mosaic_0001>
module attributes {stable_mosaic.version = 11 : i64} {
  func.func @kernel(%arg0: memref<8x32xf32, #tpu.memory_space<vmem>>, %arg1: memref<32x128xf32, #tpu.memory_space<vmem>>, %arg2: memref<2x128xf32, #tpu.memory_space<vmem>>, %arg3: memref<128x128xf32, #tpu.memory_space<vmem>>, %arg4: memref<2x128xf32, #tpu.memory_space<vmem>>, %arg5: memref<128x128xf32, #tpu.memory_space<vmem>>, %arg6: memref<1x128xf32, #tpu.memory_space<vmem>>, %arg7: memref<8x128xf32, #tpu.memory_space<vmem>>) attributes {dimension_semantics = [], scalar_prefetch = 0 : i64, scratch_operands = 0 : i64, tpu.core_type = #tpu.core_type<tc>} {
    %c0 = arith.constant 0 : index
    %c0_0 = arith.constant 0 : index
    %0 = vector.load %arg0[%c0, %c0_0] : memref<8x32xf32, #tpu.memory_space<vmem>>, vector<8x32xf32>
    %c0_1 = arith.constant 0 : index
    %c0_2 = arith.constant 0 : index
    %1 = vector.load %arg1[%c0_1, %c0_2] : memref<32x128xf32, #tpu.memory_space<vmem>>, vector<32x128xf32>
    %cst = arith.constant dense<0.000000e+00> : vector<8x128xf32>
    %2 = tpu.matmul %0, %1, %cst {dimension_numbers = #tpu.dot_dimension_numbers<[1], [0], [0], [1], [0, 0, 1, 1], [], []>} : vector<8x32xf32>, vector<32x128xf32>, vector<8x128xf32> -> vector<8x128xf32>
    %cst_3 = arith.constant dense<0.000000e+00> : vector<128xf32>
    %3 = vector.multi_reduction <add>, %2, %cst_3 [0] : vector<8x128xf32> to vector<128xf32>
    %4 = vector.shape_cast %3 : vector<128xf32> to vector<1x128xf32>
    %cst_4 = arith.constant 8.000000e+00 : f32
    %5 = vector.broadcast %cst_4 : f32 to vector<1x128xf32>
    %6 = arith.divf %4, %5 : vector<1x128xf32>
    %7 = arith.mulf %2, %2 : vector<8x128xf32>
    %cst_5 = arith.constant dense<0.000000e+00> : vector<128xf32>
    %8 = vector.multi_reduction <add>, %7, %cst_5 [0] : vector<8x128xf32> to vector<128xf32>
    %9 = vector.shape_cast %8 : vector<128xf32> to vector<1x128xf32>
    %cst_6 = arith.constant 8.000000e+00 : f32
    %10 = vector.broadcast %cst_6 : f32 to vector<1x128xf32>
    %11 = arith.divf %9, %10 : vector<1x128xf32>
    %12 = arith.mulf %6, %6 : vector<1x128xf32>
    %13 = arith.subf %11, %12 : vector<1x128xf32>
    %c0_7 = arith.constant 0 : index
    %c0_8 = arith.constant 0 : index
    %14 = vector.load %arg2[%c0_7, %c0_8] : memref<2x128xf32, #tpu.memory_space<vmem>>, vector<1x128xf32>
    %cst_9 = arith.constant 9.99999974E-6 : f32
    %15 = vector.broadcast %cst_9 : f32 to vector<1x128xf32>
    %16 = arith.addf %13, %15 : vector<1x128xf32>
    %17 = math.rsqrt %16 : vector<1x128xf32>
    %18 = arith.mulf %14, %17 : vector<1x128xf32>
    %c1 = arith.constant 1 : index
    %c0_10 = arith.constant 0 : index
    %19 = vector.load %arg2[%c1, %c0_10] : memref<2x128xf32, #tpu.memory_space<vmem>>, vector<1x128xf32>
    %20 = arith.mulf %6, %18 : vector<1x128xf32>
    %21 = arith.subf %19, %20 : vector<1x128xf32>
    %22 = vector.broadcast %18 : vector<1x128xf32> to vector<8x128xf32>
    %23 = arith.mulf %2, %22 : vector<8x128xf32>
    %24 = vector.broadcast %21 : vector<1x128xf32> to vector<8x128xf32>
    %25 = arith.addf %23, %24 : vector<8x128xf32>
    %cst_11 = arith.constant 0.000000e+00 : f32
    %26 = vector.broadcast %cst_11 : f32 to vector<8x128xf32>
    %27 = arith.maximumf %25, %26 : vector<8x128xf32>
    %c0_12 = arith.constant 0 : index
    %c0_13 = arith.constant 0 : index
    %28 = vector.load %arg3[%c0_12, %c0_13] : memref<128x128xf32, #tpu.memory_space<vmem>>, vector<128x128xf32>
    %cst_14 = arith.constant dense<0.000000e+00> : vector<8x128xf32>
    %29 = tpu.matmul %27, %28, %cst_14 {dimension_numbers = #tpu.dot_dimension_numbers<[1], [0], [0], [1], [0, 0, 1, 1], [], []>} : vector<8x128xf32>, vector<128x128xf32>, vector<8x128xf32> -> vector<8x128xf32>
    %cst_15 = arith.constant dense<0.000000e+00> : vector<128xf32>
    %30 = vector.multi_reduction <add>, %29, %cst_15 [0] : vector<8x128xf32> to vector<128xf32>
    %31 = vector.shape_cast %30 : vector<128xf32> to vector<1x128xf32>
    %cst_16 = arith.constant 8.000000e+00 : f32
    %32 = vector.broadcast %cst_16 : f32 to vector<1x128xf32>
    %33 = arith.divf %31, %32 : vector<1x128xf32>
    %34 = arith.mulf %29, %29 : vector<8x128xf32>
    %cst_17 = arith.constant dense<0.000000e+00> : vector<128xf32>
    %35 = vector.multi_reduction <add>, %34, %cst_17 [0] : vector<8x128xf32> to vector<128xf32>
    %36 = vector.shape_cast %35 : vector<128xf32> to vector<1x128xf32>
    %cst_18 = arith.constant 8.000000e+00 : f32
    %37 = vector.broadcast %cst_18 : f32 to vector<1x128xf32>
    %38 = arith.divf %36, %37 : vector<1x128xf32>
    %39 = arith.mulf %33, %33 : vector<1x128xf32>
    %40 = arith.subf %38, %39 : vector<1x128xf32>
    %c0_19 = arith.constant 0 : index
    %c0_20 = arith.constant 0 : index
    %41 = vector.load %arg4[%c0_19, %c0_20] : memref<2x128xf32, #tpu.memory_space<vmem>>, vector<1x128xf32>
    %cst_21 = arith.constant 9.99999974E-6 : f32
    %42 = vector.broadcast %cst_21 : f32 to vector<1x128xf32>
    %43 = arith.addf %40, %42 : vector<1x128xf32>
    %44 = math.rsqrt %43 : vector<1x128xf32>
    %45 = arith.mulf %41, %44 : vector<1x128xf32>
    %c1_22 = arith.constant 1 : index
    %c0_23 = arith.constant 0 : index
    %46 = vector.load %arg4[%c1_22, %c0_23] : memref<2x128xf32, #tpu.memory_space<vmem>>, vector<1x128xf32>
    %47 = arith.mulf %33, %45 : vector<1x128xf32>
    %48 = arith.subf %46, %47 : vector<1x128xf32>
    %49 = vector.broadcast %45 : vector<1x128xf32> to vector<8x128xf32>
    %50 = arith.mulf %29, %49 : vector<8x128xf32>
    %51 = vector.broadcast %48 : vector<1x128xf32> to vector<8x128xf32>
    %52 = arith.addf %50, %51 : vector<8x128xf32>
    %cst_24 = arith.constant 0.000000e+00 : f32
    %53 = vector.broadcast %cst_24 : f32 to vector<8x128xf32>
    %54 = arith.maximumf %52, %53 : vector<8x128xf32>
    %c0_25 = arith.constant 0 : index
    %c0_26 = arith.constant 0 : index
    %55 = vector.load %arg5[%c0_25, %c0_26] : memref<128x128xf32, #tpu.memory_space<vmem>>, vector<128x128xf32>
    %cst_27 = arith.constant dense<0.000000e+00> : vector<8x128xf32>
    %56 = tpu.matmul %54, %55, %cst_27 {dimension_numbers = #tpu.dot_dimension_numbers<[1], [0], [0], [1], [0, 0, 1, 1], [], []>} : vector<8x128xf32>, vector<128x128xf32>, vector<8x128xf32> -> vector<8x128xf32>
    %c0_28 = arith.constant 0 : index
    %c0_29 = arith.constant 0 : index
    %57 = vector.load %arg6[%c0_28, %c0_29] : memref<1x128xf32, #tpu.memory_space<vmem>>, vector<1x128xf32>
    %58 = vector.broadcast %57 : vector<1x128xf32> to vector<8x128xf32>
    %59 = arith.addf %56, %58 : vector<8x128xf32>
    %c0_30 = arith.constant 0 : index
    %c0_31 = arith.constant 0 : index
    %60 = vector.load %arg7[%c0_30, %c0_31] : memref<8x128xf32, #tpu.memory_space<vmem>>, vector<8x128xf32>
    tpu.vector_store %arg7[%c0_30, %c0_31], %59 {strides = array<i32>} : memref<8x128xf32, #tpu.memory_space<vmem>>, vector<8x128xf32>,
    return
  }
}

</mosaic_0001>

<llo_original>
// kernel: fsnet_forward.1
$region0: #{fsnet_forward.1}
  #allocation0 [shape = 'u32[]', space=smem, size = 0x4, offset = 0x4, fixed_abs, tag = 'smem constant byte address 0x4 - core index']
  #allocation1 [shape = 'u32[144,128]{1,0:T(1,128)}', space=vmem, size = 0x12000, scoped, tag = 'internal scratch']
  %s0 = inlined_call_operand.hbm [shape: f32[8,32], index: 0, kind: input, shape index: {}]
  %s1 = inlined_call_operand.hbm [shape: f32[32,128], index: 1, kind: input, shape index: {}]
  %s2 = inlined_call_operand.vmem [shape: f32[2,128], index: 2, kind: input, shape index: {}]
  %s3 = inlined_call_operand.hbm [shape: f32[128,128], index: 3, kind: input, shape index: {}]
  %s4 = inlined_call_operand.vmem [shape: f32[2,128], index: 4, kind: input, shape index: {}]
  %s5 = inlined_call_operand.hbm [shape: f32[128,128], index: 5, kind: input, shape index: {}]
  %s6 = inlined_call_operand.vmem [shape: f32[1,128], index: 6, kind: input, shape index: {}]
  %s7 = inlined_call_operand.hbm [shape: f32[8,128], index: 7, kind: output, shape index: {}]
  %s8 = sld [smem:[#allocation0]]
  $region54: #{fsnet_forward.1} parent=0
    _
  %s10 = ssub.s32 1, %s8
  %s11 = scalar_select 0, %s10, %s8
  $region1: #{fsnet_forward.1} parent=0
    #allocation2 [shape = 'u8[4096]{0}', space=vmem, size = 0x1000, scoped, tag = 'input window, operand 0, single buffered']
    #allocation3 [shape = 's32[1]{0}', space=sflag, size = 0x4, scoped, tag = 'scoped memory for fsnet_forward.1']
    #allocation4 [shape = 's32[1]{0}', space=sflag, size = 0x4, scoped, tag = 'scoped memory for fsnet_forward.1']
    #allocation5 [shape = 'u8[16384]{0}', space=vmem, size = 0x4000, scoped, tag = 'input window, operand 1, single buffered']
    #allocation6 [shape = 's32[1]{0}', space=sflag, size = 0x4, scoped, tag = 'scoped memory for fsnet_forward.1']
    #allocation7 [shape = 'u8[65536]{0}', space=vmem, size = 0x10000, scoped, tag = 'input window, operand 3, single buffered']
    #allocation8 [shape = 'u8[65536]{0}', space=vmem, size = 0x10000, scoped, tag = 'input window, operand 5, single buffered']
    #allocation9 [shape = 's32[1]{0}', space=sflag, size = 0x4, scoped, tag = 'scoped memory for fsnet_forward.1']
    #allocation10 [shape = 'u8[4096]{0}', space=vmem, size = 0x1000, scoped, tag = 'output window, operand 0, single buffered']
    %12 = vsyncpa [#allocation3], 0
    %13 = vsyncpa [#allocation6], 0
    %14 = vsyncpa [#allocation9], 0
    %15 = vsyncpa [#allocation4], 0
    // Predicated region
    $region2: #{fsnet_forward.1} parent=1 // pred_check
      _
    $region3: #{fsnet_forward.1} parent=1 // pred_check_branch
      %17 = sbr.rel (0) target = $region5
    $region4: #{fsnet_forward.1} parent=1 // pred_region
      %s19 = ssub.s32 128, 128
      %20 = vsyncadd [#allocation3], %s19
      %s22 = sshll.u32 [#allocation2], 4
      %s23 = int_to_ptr.vmem [resolvable:$true] %s22
      %25 = dma.hbm_to_vmem [thread:$0]  %s0, 128, %s23, [#allocation3]
    $region5: #{fsnet_forward.1} parent=1 // pred_fallthru
      _
    // Predicated region
    $region6: #{fsnet_forward.1} parent=1 // pred_check
      _
    $region7: #{fsnet_forward.1} parent=1 // pred_check_branch
      %27 = sbr.rel (0) target = $region9
    $region8: #{fsnet_forward.1} parent=1 // pred_region
      %s29 = ssub.s32 512, 512
      %30 = vsyncadd [#allocation6], %s29
      %s31 = sshll.u32 [#allocation5], 4
      %s32 = int_to_ptr.vmem [resolvable:$true] %s31
      %37 = dma.hbm_to_vmem [thread:$0]  %s1, 512, %s32, [#allocation6], 128, 128, 8
    $region9: #{fsnet_forward.1} parent=1 // pred_fallthru
      _
    // Predicated region
    $region10: #{fsnet_forward.1} parent=1 // pred_check
      _
    $region11: #{fsnet_forward.1} parent=1 // pred_check_branch
      %39 = sbr.rel (0) target = $region13
    $region12: #{fsnet_forward.1} parent=1 // pred_region
      _
    $region13: #{fsnet_forward.1} parent=1 // pred_fallthru
      _
    // Predicated region
    $region14: #{fsnet_forward.1} parent=1 // pred_check
      _
    $region15: #{fsnet_forward.1} parent=1 // pred_check_branch
      %41 = sbr.rel (0) target = $region17
    $region16: #{fsnet_forward.1} parent=1 // pred_region
      %s43 = ssub.s32 2048, 2048
      %44 = vsyncadd [#allocation6], %s43
      %s45 = sshll.u32 [#allocation7], 4
      %s46 = int_to_ptr.vmem [resolvable:$true] %s45
      %51 = dma.hbm_to_vmem [thread:$0]  %s3, 2048, %s46, [#allocation6], 128, 128, 8
    $region17: #{fsnet_forward.1} parent=1 // pred_fallthru
      _
    // Predicated region
    $region18: #{fsnet_forward.1} parent=1 // pred_check
      _
    $region19: #{fsnet_forward.1} parent=1 // pred_check_branch
      %53 = sbr.rel (0) target = $region21
    $region20: #{fsnet_forward.1} parent=1 // pred_region
      _
    $region21: #{fsnet_forward.1} parent=1 // pred_fallthru
      _
    // Predicated region
    $region22: #{fsnet_forward.1} parent=1 // pred_check
      _
    $region23: #{fsnet_forward.1} parent=1 // pred_check_branch
      %55 = sbr.rel (0) target = $region25
    $region24: #{fsnet_forward.1} parent=1 // pred_region
      %s57 = ssub.s32 2048, 2048
      %58 = vsyncadd [#allocation9], %s57
      %s59 = sshll.u32 [#allocation8], 4
      %s60 = int_to_ptr.vmem [resolvable:$true] %s59
      %65 = dma.hbm_to_vmem [thread:$0]  %s5, 2048, %s60, [#allocation9], 128, 128, 8
    $region25: #{fsnet_forward.1} parent=1 // pred_fallthru
      _
    // Predicated region
    $region26: #{fsnet_forward.1} parent=1 // pred_check
      _
    $region27: #{fsnet_forward.1} parent=1 // pred_check_branch
      %67 = sbr.rel (0) target = $region29
    $region28: #{fsnet_forward.1} parent=1 // pred_region
      _
    $region29: #{fsnet_forward.1} parent=1 // pred_fallthru
      _
    // Predicated region
    $region30: #{fsnet_forward.1} parent=1 // pred_check
      _
    $region31: #{fsnet_forward.1} parent=1 // pred_check_branch
      %69 = sbr.rel (0) target = $region33
    $region32: #{fsnet_forward.1} parent=1 // pred_region
      %70 = dma.done [#allocation3], 128
    $region33: #{fsnet_forward.1} parent=1 // pred_fallthru
      _
    // Predicated region
    $region34: #{fsnet_forward.1} parent=1 // pred_check
      _
    $region35: #{fsnet_forward.1} parent=1 // pred_check_branch
      %72 = sbr.rel (0) target = $region37
    $region36: #{fsnet_forward.1} parent=1 // pred_region
      %73 = dma.done [#allocation6], 512
    $region37: #{fsnet_forward.1} parent=1 // pred_fallthru
      _
    // Predicated region
    $region38: #{fsnet_forward.1} parent=1 // pred_check
      _
    $region39: #{fsnet_forward.1} parent=1 // pred_check_branch
      %75 = sbr.rel (0) target = $region41
    $region40: #{fsnet_forward.1} parent=1 // pred_region
      %76 = dma.done [#allocation6], 2048
    $region41: #{fsnet_forward.1} parent=1 // pred_fallthru
      _
    // Predicated region
    $region42: #{fsnet_forward.1} parent=1 // pred_check
      _
    $region43: #{fsnet_forward.1} parent=1 // pred_check_branch
      %78 = sbr.rel (0) target = $region45
    $region44: #{fsnet_forward.1} parent=1 // pred_region
      %79 = dma.done [#allocation9], 2048
    $region45: #{fsnet_forward.1} parent=1 // pred_fallthru
      _
    %v80 = vld [vmem:[#allocation2] sm:$0xff]
    %v81 = vld [vmem:[#allocation5] sm:$0xff]
    %v82 = vld [vmem:[#allocation5 + $0x8] sm:$0xff]
    %v83 = vld [vmem:[#allocation5 + $0x10] sm:$0xff]
    %v84 = vld [vmem:[#allocation5 + $0x18] sm:$0xff]
    %vm85 = vcmask 261120
    %v87 = vsel %vm85, %v80, 0
    %89 = vmatprep.subr.mxu0 0.0
    %90 = vmatpush1.msra.mxu0 0.0
    %91 = vmatprep.subr.mxu0 0.0
    %92 = vmatpush1.msra.mxu0 0.0
    %93 = vmatprep.subr.mxu0 0.0
    %94 = vmatpush1.msra.mxu0 0.0
    %95 = vmatprep.subr.mxu0 0.0
    %96 = vmatpush1.msra.mxu0 0.0
    %97 = vmatprep.subr.mxu0 0.0
    %98 = vmatpush1.msra.mxu0 0.0
    %99 = vmatprep.subr.mxu0 0.0
    %100 = vmatpush1.msra.mxu0 0.0
    %101 = vmatprep.subr.mxu0 0.0
    %102 = vmatpush1.msra.mxu0 0.0
    %103 = vmatprep.subr.mxu0 0.0
    %104 = vmatpush1.msra.mxu0 0.0
    %105 = vmatprep.subr.mxu0 0.0
    %106 = vmatpush1.msra.mxu0 0.0
    %107 = vmatprep.subr.mxu0 0.0
    %108 = vmatpush1.msra.mxu0 0.0
    %109 = vmatprep.subr.mxu0 0.0
    %110 = vmatpush1.msra.mxu0 0.0
    %111 = vmatprep.subr.mxu0 0.0
    %112 = vmatpush1.msra.mxu0 0.0
    %113 = vmatprep.subr.mxu0 0.0
    %114 = vmatpush1.msra.mxu0 %v84
    %115 = vmatprep.subr.mxu0 0.0
    %116 = vmatpush1.msra.mxu0 %v83
    %117 = vmatprep.subr.mxu0 0.0
    %118 = vmatpush1.msra.mxu0 %v82
    %119 = vmatprep.subr.mxu0 0.0
    %120 = vmatpush1.msra.mxu0 %v81
    %121 = vmatprep.subr.mxu0 0.0
    %122 = vmatpush2.msra.mxu0 0.0
    %123 = vmatprep.subr.mxu0 0.0
    %124 = vmatpush2.msra.mxu0 0.0
    %125 = vmatprep.subr.mxu0 0.0
    %126 = vmatpush2.msra.mxu0 0.0
    %127 = vmatprep.subr.mxu0 0.0
    %128 = vmatpush2.msra.mxu0 0.0
    %129 = vmatprep.subr.mxu0 0.0
    %130 = vmatpush2.msra.mxu0 0.0
    %131 = vmatprep.subr.mxu0 0.0
    %132 = vmatpush2.msra.mxu0 0.0
    %133 = vmatprep.subr.mxu0 0.0
    %134 = vmatpush2.msra.mxu0 0.0
    %135 = vmatprep.subr.mxu0 0.0
    %136 = vmatpush2.msra.mxu0 0.0
    %137 = vmatprep.subr.mxu0 0.0
    %138 = vmatpush2.msra.mxu0 0.0
    %139 = vmatprep.subr.mxu0 0.0
    %140 = vmatpush2.msra.mxu0 0.0
    %141 = vmatprep.subr.mxu0 0.0
    %142 = vmatpush2.msra.mxu0 0.0
    %143 = vmatprep.subr.mxu0 0.0
    %144 = vmatpush2.msra.mxu0 0.0
    %145 = vmatprep.subr.mxu0 0.0
    %146 = vmatpush2.msra.mxu0 0.0
    %147 = vmatprep.subr.mxu0 0.0
    %148 = vmatpush2.msra.mxu0 0.0
    %149 = vmatprep.subr.mxu0 0.0
    %150 = vmatpush2.msra.mxu0 0.0
    %151 = vmatprep.subr.mxu0 0.0
    %152 = vmatpush2.msra.mxu0 0.0
    %153 = vmatprep.mubr.f32.mxu0 0.0
    %154 = vmatmul.mubr.f32.gmra.mxu0 %v87
    %v155 = vpop.f32.mrf.mxu0
    %v156 = vadd.f32 0.0, %v155
    %v157 = vpop.f32.mrf.mxu0
    %158 = vdwg.mxu0
    %v159 = vrot.slane %v156, 4
    %v160 = vadd.f32 %v156, %v159
    %v161 = vrot.slane %v160, 2
    %v162 = vadd.f32 %v160, %v161
    %v163 = vrot.slane %v162, 1
    %v164 = vadd.f32 %v162, %v163
    %v165 = vrcp.pop 8.0
    %v166 = vmul.f32 %v164, %v165
    %v167 = vmul.f32 %v156, %v156
    %v168 = vrot.slane %v167, 4
    %v169 = vadd.f32 %v167, %v168
    %v170 = vrot.slane %v169, 2
    %v171 = vadd.f32 %v169, %v170
    %v172 = vrot.slane %v171, 1
    %v173 = vadd.f32 %v171, %v172
    %v174 = vmul.f32 %v173, %v165
    %v175 = vmul.f32 %v166, %v166
    %v176 = vsub.f32 %v174, %v175
    %v177 = vld [vmem:[%s2] sm:$0x1]
    %v178 = vadd.f32 %v176, 1e-05
    %v179 = vrsqrt.pop %v178
    %v180 = vmul.f32 %v177, %v179
    %v181 = vld [vmem:[%s2 + $0x1] sm:$0x1]
    %v182 = vmul.f32 %v166, %v180
    %v183 = vsub.f32 %v181, %v182
    %v184 = vlaneseq
    %v185 = vshrl.u32 %v184, 7
    %v186 = vsub.s32 0, %v185
    %v187 = vrot.slane %v180, %v186
    %v188 = vmul.f32 %v156, %v187
    %v189 = vlaneseq
    %v190 = vshrl.u32 %v189, 7
    %v191 = vsub.s32 0, %v190
    %v192 = vrot.slane %v183, %v191
    %v193 = vadd.f32 %v188, %v192
    %v194 = vmax.f32 %v193, 0.0
    %v195 = vld [vmem:[#allocation7] sm:$0xff]
    %v196 = vld [vmem:[#allocation7 + $0x8] sm:$0xff]
    %v197 = vld [vmem:[#allocation7 + $0x10] sm:$0xff]
    %v198 = vld [vmem:[#allocation7 + $0x18] sm:$0xff]
    %v199 = vld [vmem:[#allocation7 + $0x20] sm:$0xff]
    %v200 = vld [vmem:[#allocation7 + $0x28] sm:$0xff]
    %v201 = vld [vmem:[#allocation7 + $0x30] sm:$0xff]
    %v202 = vld [vmem:[#allocation7 + $0x38] sm:$0xff]
    %v203 = vld [vmem:[#allocation7 + $0x40] sm:$0xff]
    %v204 = vld [vmem:[#allocation7 + $0x48] sm:$0xff]
    %v205 = vld [vmem:[#allocation7 + $0x50] sm:$0xff]
    %v206 = vld [vmem:[#allocation7 + $0x58] sm:$0xff]
    %v207 = vld [vmem:[#allocation7 + $0x60] sm:$0xff]
    %v208 = vld [vmem:[#allocation7 + $0x68] sm:$0xff]
    %v209 = vld [vmem:[#allocation7 + $0x70] sm:$0xff]
    %v210 = vld [vmem:[#allocation7 + $0x78] sm:$0xff]
    %211 = vmatprep.subr.mxu0 0.0
    %212 = vmatpush1.msra.mxu0 %v210
    %213 = vmatprep.subr.mxu0 0.0
    %214 = vmatpush1.msra.mxu0 %v209
    %215 = vmatprep.subr.mxu0 0.0
    %216 = vmatpush1.msra.mxu0 %v208
    %217 = vmatprep.subr.mxu0 0.0
    %218 = vmatpush1.msra.mxu0 %v207
    %219 = vmatprep.subr.mxu0 0.0
    %220 = vmatpush1.msra.mxu0 %v206
    %221 = vmatprep.subr.mxu0 0.0
    %222 = vmatpush1.msra.mxu0 %v205
    %223 = vmatprep.subr.mxu0 0.0
    %224 = vmatpush1.msra.mxu0 %v204
    %225 = vmatprep.subr.mxu0 0.0
    %226 = vmatpush1.msra.mxu0 %v203
    %227 = vmatprep.subr.mxu0 0.0
    %228 = vmatpush1.msra.mxu0 %v202
    %229 = vmatprep.subr.mxu0 0.0
    %230 = vmatpush1.msra.mxu0 %v201
    %231 = vmatprep.subr.mxu0 0.0
    %232 = vmatpush1.msra.mxu0 %v200
    %233 = vmatprep.subr.mxu0 0.0
    %234 = vmatpush1.msra.mxu0 %v199
    %235 = vmatprep.subr.mxu0 0.0
    %236 = vmatpush1.msra.mxu0 %v198
    %237 = vmatprep.subr.mxu0 0.0
    %238 = vmatpush1.msra.mxu0 %v197
    %239 = vmatprep.subr.mxu0 0.0
    %240 = vmatpush1.msra.mxu0 %v196
    %241 = vmatprep.subr.mxu0 0.0
    %242 = vmatpush1.msra.mxu0 %v195
    %243 = vmatprep.subr.mxu0 0.0
    %244 = vmatpush2.msra.mxu0 0.0
    %245 = vmatprep.subr.mxu0 0.0
    %246 = vmatpush2.msra.mxu0 0.0
    %247 = vmatprep.subr.mxu0 0.0
    %248 = vmatpush2.msra.mxu0 0.0
    %249 = vmatprep.subr.mxu0 0.0
    %250 = vmatpush2.msra.mxu0 0.0
    %251 = vmatprep.subr.mxu0 0.0
    %252 = vmatpush2.msra.mxu0 0.0
    %253 = vmatprep.subr.mxu0 0.0
    %254 = vmatpush2.msra.mxu0 0.0
    %255 = vmatprep.subr.mxu0 0.0
    %256 = vmatpush2.msra.mxu0 0.0
    %257 = vmatprep.subr.mxu0 0.0
    %258 = vmatpush2.msra.mxu0 0.0
    %259 = vmatprep.subr.mxu0 0.0
    %260 = vmatpush2.msra.mxu0 0.0
    %261 = vmatprep.subr.mxu0 0.0
    %262 = vmatpush2.msra.mxu0 0.0
    %263 = vmatprep.subr.mxu0 0.0
    %264 = vmatpush2.msra.mxu0 0.0
    %265 = vmatprep.subr.mxu0 0.0
    %266 = vmatpush2.msra.mxu0 0.0
    %267 = vmatprep.subr.mxu0 0.0
    %268 = vmatpush2.msra.mxu0 0.0
    %269 = vmatprep.subr.mxu0 0.0
    %270 = vmatpush2.msra.mxu0 0.0
    %271 = vmatprep.subr.mxu0 0.0
    %272 = vmatpush2.msra.mxu0 0.0
    %273 = vmatprep.subr.mxu0 0.0
    %274 = vmatpush2.msra.mxu0 0.0
    %275 = vmatprep.mubr.f32.mxu0 0.0
    %276 = vmatmul.mubr.f32.gmra.mxu0 %v194
    %v277 = vpop.f32.mrf.mxu0
    %v278 = vadd.f32 0.0, %v277
    %v279 = vpop.f32.mrf.mxu0
    %280 = vdwg.mxu0
    %v281 = vrot.slane %v278, 4
    %v282 = vadd.f32 %v278, %v281
    %v283 = vrot.slane %v282, 2
    %v284 = vadd.f32 %v282, %v283
    %v285 = vrot.slane %v284, 1
    %v286 = vadd.f32 %v284, %v285
    %v287 = vmul.f32 %v286, %v165
    %v288 = vmul.f32 %v278, %v278
    %v289 = vrot.slane %v288, 4
    %v290 = vadd.f32 %v288, %v289
    %v291 = vrot.slane %v290, 2
    %v292 = vadd.f32 %v290, %v291
    %v293 = vrot.slane %v292, 1
    %v294 = vadd.f32 %v292, %v293
    %v295 = vmul.f32 %v294, %v165
    %v296 = vmul.f32 %v287, %v287
    %v297 = vsub.f32 %v295, %v296
    %v298 = vld [vmem:[%s4] sm:$0x1]
    %v299 = vadd.f32 %v297, 1e-05
    %v300 = vrsqrt.pop %v299
    %v301 = vmul.f32 %v298, %v300
    %v302 = vld [vmem:[%s4 + $0x1] sm:$0x1]
    %v303 = vmul.f32 %v287, %v301
    %v304 = vsub.f32 %v302, %v303
    %v305 = vlaneseq
    %v306 = vshrl.u32 %v305, 7
    %v307 = vsub.s32 0, %v306
    %v308 = vrot.slane %v301, %v307
    %v309 = vmul.f32 %v278, %v308
    %v310 = vlaneseq
    %v311 = vshrl.u32 %v310, 7
    %v312 = vsub.s32 0, %v311
    %v313 = vrot.slane %v304, %v312
    %v314 = vadd.f32 %v309, %v313
    %v315 = vmax.f32 %v314, 0.0
    %v316 = vld [vmem:[#allocation8] sm:$0xff]
    %v317 = vld [vmem:[#allocation8 + $0x8] sm:$0xff]
    %v318 = vld [vmem:[#allocation8 + $0x10] sm:$0xff]
    %v319 = vld [vmem:[#allocation8 + $0x18] sm:$0xff]
    %v320 = vld [vmem:[#allocation8 + $0x20] sm:$0xff]
    %v321 = vld [vmem:[#allocation8 + $0x28] sm:$0xff]
    %v322 = vld [vmem:[#allocation8 + $0x30] sm:$0xff]
    %v323 = vld [vmem:[#allocation8 + $0x38] sm:$0xff]
    %v324 = vld [vmem:[#allocation8 + $0x40] sm:$0xff]
    %v325 = vld [vmem:[#allocation8 + $0x48] sm:$0xff]
    %v326 = vld [vmem:[#allocation8 + $0x50] sm:$0xff]
    %v327 = vld [vmem:[#allocation8 + $0x58] sm:$0xff]
    %v328 = vld [vmem:[#allocation8 + $0x60] sm:$0xff]
    %v329 = vld [vmem:[#allocation8 + $0x68] sm:$0xff]
    %v330 = vld [vmem:[#allocation8 + $0x70] sm:$0xff]
    %v331 = vld [vmem:[#allocation8 + $0x78] sm:$0xff]
    %v332 = vld [vmem:[%s6] sm:$0x1]
    %v334 = vlaneseq
    %v335 = vshrl.u32 %v334, 7
    %v336 = vsub.s32 0, %v335
    %v337 = vrot.slane %v332, %v336
    %339 = vmatprep.subr.mxu0 0.0
    %340 = vmatpush1.msra.mxu0 %v331
    %341 = vmatprep.subr.mxu0 0.0
    %342 = vmatpush1.msra.mxu0 %v330
    %343 = vmatprep.subr.mxu0 0.0
    %344 = vmatpush1.msra.mxu0 %v329
    %345 = vmatprep.subr.mxu0 0.0
    %346 = vmatpush1.msra.mxu0 %v328
    %347 = vmatprep.subr.mxu0 0.0
    %348 = vmatpush1.msra.mxu0 %v327
    %349 = vmatprep.subr.mxu0 0.0
    %350 = vmatpush1.msra.mxu0 %v326
    %351 = vmatprep.subr.mxu0 0.0
    %352 = vmatpush1.msra.mxu0 %v325
    %353 = vmatprep.subr.mxu0 0.0
    %354 = vmatpush1.msra.mxu0 %v324
    %355 = vmatprep.subr.mxu0 0.0
    %356 = vmatpush1.msra.mxu0 %v323
    %357 = vmatprep.subr.mxu0 0.0
    %358 = vmatpush1.msra.mxu0 %v322
    %359 = vmatprep.subr.mxu0 0.0
    %360 = vmatpush1.msra.mxu0 %v321
    %361 = vmatprep.subr.mxu0 0.0
    %362 = vmatpush1.msra.mxu0 %v320
    %363 = vmatprep.subr.mxu0 0.0
    %364 = vmatpush1.msra.mxu0 %v319
    %365 = vmatprep.subr.mxu0 0.0
    %366 = vmatpush1.msra.mxu0 %v318
    %367 = vmatprep.subr.mxu0 0.0
    %368 = vmatpush1.msra.mxu0 %v317
    %369 = vmatprep.subr.mxu0 0.0
    %370 = vmatpush1.msra.mxu0 %v316
    %371 = vmatprep.subr.mxu0 0.0
    %372 = vmatpush2.msra.mxu0 0.0
    %373 = vmatprep.subr.mxu0 0.0
    %374 = vmatpush2.msra.mxu0 0.0
    %375 = vmatprep.subr.mxu0 0.0
    %376 = vmatpush2.msra.mxu0 0.0
    %377 = vmatprep.subr.mxu0 0.0
    %378 = vmatpush2.msra.mxu0 0.0
    %379 = vmatprep.subr.mxu0 0.0
    %380 = vmatpush2.msra.mxu0 0.0
    %381 = vmatprep.subr.mxu0 0.0
    %382 = vmatpush2.msra.mxu0 0.0
    %383 = vmatprep.subr.mxu0 0.0
    %384 = vmatpush2.msra.mxu0 0.0
    %385 = vmatprep.subr.mxu0 0.0
    %386 = vmatpush2.msra.mxu0 0.0
    %387 = vmatprep.subr.mxu0 0.0
    %388 = vmatpush2.msra.mxu0 0.0
    %389 = vmatprep.subr.mxu0 0.0
    %390 = vmatpush2.msra.mxu0 0.0
    %391 = vmatprep.subr.mxu0 0.0
    %392 = vmatpush2.msra.mxu0 0.0
    %393 = vmatprep.subr.mxu0 0.0
    %394 = vmatpush2.msra.mxu0 0.0
    %395 = vmatprep.subr.mxu0 0.0
    %396 = vmatpush2.msra.mxu0 0.0
    %397 = vmatprep.subr.mxu0 0.0
    %398 = vmatpush2.msra.mxu0 0.0
    %399 = vmatprep.subr.mxu0 0.0
    %400 = vmatpush2.msra.mxu0 0.0
    %401 = vmatprep.subr.mxu0 0.0
    %402 = vmatpush2.msra.mxu0 0.0
    %403 = vmatprep.mubr.f32.mxu0 0.0
    %404 = vmatmul.mubr.f32.gmra.mxu0 %v315
    %v405 = vpop.f32.mrf.mxu0
    %v406 = vadd.f32 %v337, %v405
    %v407 = vpop.f32.mrf.mxu0
    %408 = vdwg.mxu0
    %409 = vst [vmem:[#allocation10] sm:$0xff] %v406
    // Predicated region
    $region46: #{fsnet_forward.1} parent=1 // pred_check
      _
    $region47: #{fsnet_forward.1} parent=1 // pred_check_branch
      %411 = sbr.rel (0) target = $region49
    $region48: #{fsnet_forward.1} parent=1 // pred_region
      %s413 = ssub.s32 128, 128
      %414 = vsyncadd [#allocation4], %s413
      %s416 = sshll.u32 [#allocation10], 4
      %s417 = int_to_ptr.vmem [resolvable:$true] %s416
      %419 = dma.vmem_to_hbm [thread:$0]  %s417, 128, %s7, [#allocation4]
    $region49: #{fsnet_forward.1} parent=1 // pred_fallthru
      _
    // Predicated region
    $region50: #{fsnet_forward.1} parent=1 // pred_check
      _
    $region51: #{fsnet_forward.1} parent=1 // pred_check_branch
      %421 = sbr.rel (0) target = $region53
    $region52: #{fsnet_forward.1} parent=1 // pred_region
      %422 = dma.done [#allocation4], 128
    $region53: #{fsnet_forward.1} parent=1 // pred_fallthru
      _
    %423 = vsyncpa [#allocation3], 1
    %424 = vsyncpa [#allocation6], 1
    %425 = vsyncpa [#allocation9], 1
    %426 = vsyncpa [#allocation4], 1

</llo_original>
